<compile_context>
chip_gen: v6e
topology: v6e:2x2x1
jax: 0.10.0
libtpu: 0.0.40
codegen_flags: <defaults>
</compile_context>

<pallas_src>
import jax
import jax.numpy as jnp
from jax.experimental import pallas as pl
from jax.experimental.pallas import tpu as pltpu


_LANES = 128
_TARGET_BLOCK_BYTES = 4 * 1024 * 1024  # ~4 MiB input block per grid step
_VMEM_LIMIT_BYTES = 32 * 1024 * 1024   # safe on v5e/v6e/v7x (<= physical VMEM)


def _elu_plus_kernel(x_ref, o_ref):
    x = x_ref[...]
    # ELU(alpha=1) + 1  ==  where(x > 0, x + 1, exp(x)).
    # Guard exp with min(x, 0) so large positive x never produces an +inf
    # intermediate (the select would discard it anyway; this is free on EUP).
    exp_x = jnp.exp(jnp.minimum(x, 0.0))
    o_ref[...] = jnp.where(x > 0, x + 1.0, exp_x).astype(o_ref.dtype)


def _round_up(a, b):
    return ((a + b - 1) // b) * b


def _num_tensorcores():
    """Best-effort TensorCore-per-chip count (v7x has 2). Never raises."""
    try:
        info = pltpu.get_tpu_info()
        for attr in ("num_cores", "num_tensorcores", "tensorcores_per_chip",
                     "cores_per_chip", "core_count"):
            v = getattr(info, attr, None)
            if isinstance(v, int) and 0 < v <= 8:
                return v
    except Exception:
        pass
    try:
        kind = jax.devices()[0].device_kind.lower()
        if "7" in kind:  # TPU v7x: 2 TensorCores per chip
            return 2
    except Exception:
        pass
    return 1


def elu_plus(x, *, target_block_bytes=_TARGET_BLOCK_BYTES, donate=False):
    """Apply ELU(x) + 1 elementwise via a Pallas TPU kernel.

    Works for any input shape / float dtype; returns same shape/dtype as x.
    If `donate=True`, the input HBM buffer is aliased to the output (only use
    when the caller no longer needs x).
    """
    orig_shape = x.shape
    dtype = x.dtype
    n = x.size
    if n == 0:
        return x

    itemsize = jnp.dtype(dtype).itemsize
    lanes = _LANES
    # Minimum sublane multiple for the dtype (f32: 8, bf16: 16, 8-bit: 32).
    sub = max(8, 32 // max(itemsize, 1))
    num_tc = _num_tensorcores()

    cost = pl.CostEstimate(
        flops=2 * n,
        transcendentals=n,
        bytes_accessed=2 * n * itemsize,
    )
    io_alias = {0: 0} if donate else {}
    cparams_grid = pltpu.CompilerParams(
        dimension_semantics=("parallel",),
        vmem_limit_bytes=_VMEM_LIMIT_BYTES,
    )

    flat = x.reshape(-1)

    if n % lanes == 0:
        # ---------------- Fast path: metadata-only reshape ----------------
        rows = n // lanes
        # Block rows sized in bytes (dtype-scaled) so per-step DMA time is
        # constant across dtypes; always a multiple of `sub`.
        block_rows = max(sub, (target_block_bytes // (lanes * itemsize)) // sub * sub)

        if rows <= block_rows:
            if num_tc > 1 and rows >= 2 * sub:
                # Split evenly across both v7x TensorCores.
                block_rows = _round_up(pl.cdiv(rows, 2), sub)
            else:
                # Single-TC chip (v5e/v6e) or tiny input: one step, no forced
                # split (saves a grid step with zero parallelism benefit).
                block_rows = rows
        else:
            nblk = pl.cdiv(rows, block_rows)
            if num_tc > 1 and nblk < 16 and nblk % num_tc != 0:
                # Small odd grid would load one v7x TC with 2/3 of the work;
                # round the step count to a multiple of the TC count.
                nblk = _round_up(nblk, num_tc)
                block_rows = max(sub, _round_up(pl.cdiv(rows, nblk), sub))

        grid = (pl.cdiv(rows, block_rows),)
        slab = flat.reshape(rows, lanes)

        out = pl.pallas_call(
            _elu_plus_kernel,
            out_shape=jax.ShapeDtypeStruct((rows, lanes), dtype),
            grid=grid,
            in_specs=[pl.BlockSpec((block_rows, lanes), lambda i: (i, 0))],
            out_specs=pl.BlockSpec((block_rows, lanes), lambda i: (i, 0)),
            compiler_params=cparams_grid,
            cost_estimate=cost,
            input_output_aliases=io_alias,
        )(slab)
        return out.reshape(orig_shape)

    # ---------------- Ragged fallback (n % 128 != 0) ----------------
    # Operate directly on the flat 1-D array and let Pallas mask the partial
    # last block: no pad/slice round trips, HBM traffic stays ~1x.
    vreg_elems = sub * lanes
    block_elems = max(vreg_elems,
                      (target_block_bytes // itemsize) // vreg_elems * vreg_elems)

    if n <= block_elems:
        # Whole array as one block (block shape == array shape: always legal).
        out = pl.pallas_call(
            _elu_plus_kernel,
            out_shape=jax.ShapeDtypeStruct((n,), dtype),
            compiler_params=pltpu.CompilerParams(
                vmem_limit_bytes=_VMEM_LIMIT_BYTES),
            cost_estimate=cost,
            input_output_aliases=io_alias,
        )(flat)
    else:
        nblk = pl.cdiv(n, block_elems)
        if num_tc > 1 and nblk < 16 and nblk % num_tc != 0:
            nblk = _round_up(nblk, num_tc)
            block_elems = max(vreg_elems,
                              _round_up(pl.cdiv(n, nblk), vreg_elems))
        out = pl.pallas_call(
            _elu_plus_kernel,
            out_shape=jax.ShapeDtypeStruct((n,), dtype),
            grid=(pl.cdiv(n, block_elems),),
            in_specs=[pl.BlockSpec((block_elems,), lambda i: (i,))],
            out_specs=pl.BlockSpec((block_elems,), lambda i: (i,)),
            compiler_params=cparams_grid,
            cost_estimate=cost,
            input_output_aliases=io_alias,
        )(flat)
    return out.reshape(orig_shape)


if __name__ == "__main__":
    key = jax.random.PRNGKey(0)

    # Small NCHW input consistent with a conv-style module (fast, aligned path).
    x = jax.random.normal(key, (2, 4, 16, 16), dtype=jnp.float32)
    y = elu_plus(x)
    jax.block_until_ready(y)
    ref = jnp.where(x > 0, x, jnp.exp(x) - 1.0) + 1.0
    assert y.shape == x.shape and y.dtype == x.dtype
    assert jnp.allclose(y, ref, atol=1e-6, rtol=1e-6)

    # Ragged (non-multiple-of-128) fallback path.
    x2 = jax.random.normal(jax.random.PRNGKey(1), (3, 5, 7), dtype=jnp.float32)
    y2 = elu_plus(x2)
    jax.block_until_ready(y2)
    ref2 = jnp.where(x2 > 0, x2, jnp.exp(x2) - 1.0) + 1.0
    assert y2.shape == x2.shape and y2.dtype == x2.dtype
    assert jnp.allclose(y2, ref2, atol=1e-6, rtol=1e-6)

    # bf16 activations (dtype-scaled block sizing path).
    x3 = jax.random.normal(jax.random.PRNGKey(2), (4, 4, 8, 8), dtype=jnp.bfloat16)
    y3 = elu_plus(x3)
    jax.block_until_ready(y3)
    ref3 = (jnp.where(x3 > 0, x3.astype(jnp.float32),
                      jnp.exp(x3.astype(jnp.float32)) - 1.0) + 1.0)
    assert y3.shape == x3.shape and y3.dtype == x3.dtype
    assert jnp.allclose(y3.astype(jnp.float32), ref3, atol=2e-2, rtol=2e-2)

    print("KERNEL_OK")
</pallas_src>

<mosaic_0001>
module attributes {stable_mosaic.version = 11 : i64} {
  func.func @_elu_plus_kernel(%arg0: i32, %arg1: memref<16x128xf32, #tpu.memory_space<vmem>>, %arg2: memref<16x128xf32, #tpu.memory_space<vmem>>) attributes {dimension_semantics = [#tpu.dimension_semantics<parallel>], iteration_bounds = array<i64: 1>, scalar_prefetch = 0 : i64, scratch_operands = 0 : i64, tpu.core_type = #tpu.core_type<tc>, window_params = [{transform_indices = @transform_0, window_bounds = array<i64: 16, 128>}, {transform_indices = @transform_1, window_bounds = array<i64: 16, 128>}]} {
    %c0 = arith.constant 0 : index
    %c0_0 = arith.constant 0 : index
    %0 = vector.load %arg1[%c0, %c0_0] : memref<16x128xf32, #tpu.memory_space<vmem>>, vector<16x128xf32>
    %cst = arith.constant 0.000000e+00 : f32
    %1 = vector.broadcast %cst : f32 to vector<16x128xf32>
    %2 = arith.minimumf %0, %1 : vector<16x128xf32>
    %3 = math.exp %2 : vector<16x128xf32>
    %cst_1 = arith.constant 0.000000e+00 : f32
    %4 = vector.broadcast %cst_1 : f32 to vector<16x128xf32>
    %5 = arith.cmpf ogt, %0, %4 : vector<16x128xf32>
    %cst_2 = arith.constant 1.000000e+00 : f32
    %6 = vector.broadcast %cst_2 : f32 to vector<16x128xf32>
    %7 = arith.addf %0, %6 : vector<16x128xf32>
    %8 = arith.select %5, %7, %3 : vector<16x128xi1>, vector<16x128xf32>
    %c0_3 = arith.constant 0 : index
    %c0_4 = arith.constant 0 : index
    %9 = vector.load %arg2[%c0_3, %c0_4] : memref<16x128xf32, #tpu.memory_space<vmem>>, vector<16x128xf32>
    tpu.vector_store %arg2[%c0_3, %c0_4], %8 {strides = array<i32>} : memref<16x128xf32, #tpu.memory_space<vmem>>, vector<16x128xf32>,
    return
  }
  func.func @transform_0(%arg0: i32) -> (i32, i32) {
    %c0_i32 = arith.constant 0 : i32
    %c0_i32_0 = arith.constant 0 : i32
    return %arg0, %c0_i32 : i32, i32
  }
  func.func @transform_1(%arg0: i32) -> (i32, i32) {
    %c0_i32 = arith.constant 0 : i32
    %c0_i32_0 = arith.constant 0 : i32
    return %arg0, %c0_i32 : i32, i32
  }
}

</mosaic_0001>

<llo_original>
// kernel: tpu_custom_call.1
$region0: #{tpu_custom_call.1}
  #allocation0 [shape = 'u32[]', space=smem, size = 0x4, offset = 0x4, fixed_abs, tag = 'smem constant byte address 0x4 - core index']
  #allocation1 [shape = 'u32[144,128]{1,0:T(1,128)}', space=vmem, size = 0x12000, scoped, tag = 'internal scratch']
  %s0 = inlined_call_operand.hbm [shape: f32[16,128], index: 0, kind: input, shape index: {}]
  %s1 = inlined_call_operand.hbm [shape: f32[16,128], index: 1, kind: output, shape index: {}]
  %s2 = sld [smem:[#allocation0]]
  $region18: #{tpu_custom_call.1} parent=0
    _
  %s4 = ssub.s32 1, %s2
  %s5 = scalar_select 0, %s4, %s2
  $region1: #{tpu_custom_call.1} parent=0
    #allocation2 [shape = 'u8[8192]{0}', space=vmem, size = 0x2000, scoped, tag = 'input window, operand 0, single buffered']
    #allocation3 [shape = 's32[1]{0}', space=sflag, size = 0x4, scoped, tag = 'scoped memory for tpu_custom_call.1']
    #allocation4 [shape = 's32[1]{0}', space=sflag, size = 0x4, scoped, tag = 'scoped memory for tpu_custom_call.1']
    #allocation5 [shape = 'u8[8192]{0}', space=vmem, size = 0x2000, scoped, tag = 'output window, operand 0, single buffered']
    %6 = vsyncpa [#allocation3], 0
    %7 = vsyncpa [#allocation4], 0
    // Predicated region
    $region2: #{tpu_custom_call.1} parent=1 // pred_check
      _
    $region3: #{tpu_custom_call.1} parent=1 // pred_check_branch
      %9 = sbr.rel (0) target = $region5
    $region4: #{tpu_custom_call.1} parent=1 // pred_region
      %s11 = ssub.s32 256, 256
      %12 = vsyncadd [#allocation3], %s11
      %s13 = sshll.u32 [#allocation2], 4
      %s14 = int_to_ptr.vmem [resolvable:$true] %s13
      %19 = dma.hbm_to_vmem [thread:$0]  %s0, 256, %s14, [#allocation3], 128, 128, 8
    $region5: #{tpu_custom_call.1} parent=1 // pred_fallthru
      _
    // Predicated region
    $region6: #{tpu_custom_call.1} parent=1 // pred_check
      _
    $region7: #{tpu_custom_call.1} parent=1 // pred_check_branch
      %21 = sbr.rel (0) target = $region9
    $region8: #{tpu_custom_call.1} parent=1 // pred_region
      %22 = dma.done [#allocation3], 256
    $region9: #{tpu_custom_call.1} parent=1 // pred_fallthru
      _
    %v23 = vld [vmem:[#allocation2] sm:$0xff]
    %v24 = vld [vmem:[#allocation2 + $0x8] sm:$0xff]
    %v25 = vmin.f32 %v23, 0.0
    %v26 = vmin.f32 %v24, 0.0
    %v27 = vmul.f32 %v25, 1.442695
    %v28 = vpow.pop %v27
    %v29 = vmul.f32 %v26, 1.442695
    %v30 = vpow.pop %v29
    %vm31 = vcmp.gt.f32.partialorder %v23, 0.0
    %vm32 = vcmp.gt.f32.partialorder %v24, 0.0
    %v33 = vadd.f32 %v23, 1.0
    %v34 = vadd.f32 %v24, 1.0
    %v35 = vsel %vm31, %v33, %v28
    %v36 = vsel %vm32, %v34, %v30
    %37 = vst [vmem:[#allocation5] sm:$0xff] %v35
    %38 = vst [vmem:[#allocation5 + $0x8] sm:$0xff] %v36
    // Predicated region
    $region10: #{tpu_custom_call.1} parent=1 // pred_check
      _
    $region11: #{tpu_custom_call.1} parent=1 // pred_check_branch
      %40 = sbr.rel (0) target = $region13
    $region12: #{tpu_custom_call.1} parent=1 // pred_region
      %s42 = ssub.s32 256, 256
      %43 = vsyncadd [#allocation4], %s42
      %s44 = sshll.u32 [#allocation5], 4
      %s45 = int_to_ptr.vmem [resolvable:$true] %s44
      %50 = dma.vmem_to_hbm [thread:$0]  %s45, 256, %s1, [#allocation4], 128, 128, 8
    $region13: #{tpu_custom_call.1} parent=1 // pred_fallthru
      _
    // Predicated region
    $region14: #{tpu_custom_call.1} parent=1 // pred_check
      _
    $region15: #{tpu_custom_call.1} parent=1 // pred_check_branch
      %52 = sbr.rel (0) target = $region17
    $region16: #{tpu_custom_call.1} parent=1 // pred_region
      %53 = dma.done [#allocation4], 256
    $region17: #{tpu_custom_call.1} parent=1 // pred_fallthru
      _
    %54 = vsyncpa [#allocation3], 1
    %55 = vsyncpa [#allocation4], 1

</llo_original>
